<compile_context>
chip_gen: v6e
topology: v6e:2x2x1
jax: 0.10.0
libtpu: 0.0.40
codegen_flags: <defaults>
</compile_context>

<pallas_src>
import functools

import jax
import jax.numpy as jnp
import numpy as np
from jax.experimental import pallas as pl
from jax.experimental.pallas import tpu as pltpu

HEAD_ROWS = 8   # sublane rows of the fused mu|var head (row 0 = mu, row 1 = var)
LANE = 128      # TPU lane width; batch tiles are multiples of this


def _cdiv(a, b):
    return -(-a // b)


def _round_up(n, m):
    return _cdiv(n, m) * m


def actor_kernel(x_ref, w1_ref, b1_ref, w2_ref, b2_ref, w3_ref, b3_ref,
                 wh_ref, bh_ref, out_ref):
    wdt = w1_ref.dtype  # matmul-operand dtype (bf16 by default); accum is f32

    # base: 3 x (Linear -> ReLU).  MXU operands in wdt, f32 accumulation,
    # f32 bias add + ReLU on the VPU.
    h = jnp.maximum(
        jnp.dot(x_ref[...].astype(wdt), w1_ref[...],
                preferred_element_type=jnp.float32) + b1_ref[...], 0.0)
    h = jnp.maximum(
        jnp.dot(h.astype(wdt), w2_ref[...],
                preferred_element_type=jnp.float32) + b2_ref[...], 0.0)
    h = jnp.maximum(
        jnp.dot(h.astype(wdt), w3_ref[...],
                preferred_element_type=jnp.float32) + b3_ref[...], 0.0)

    # fused head, batch-on-lanes: (8, fc3) x (TB, fc3)^T -> (8, TB).
    # Row 0 = mu pre-activation, row 1 = var pre-activation, rows 2..7 are
    # zero padding (discarded by the wrapper).  Kept f32 (negligible FLOPs,
    # exact one-vreg (8, 128) lhs).
    pre = jax.lax.dot_general(
        wh_ref[...], h,
        dimension_numbers=(((1,), (1,)), ((), ())),
        preferred_element_type=jnp.float32) + bh_ref[...]

    row = jax.lax.broadcasted_iota(jnp.int32, pre.shape, 0)
    tanh_v = jnp.tanh(pre)
    # numerically-stable softplus
    softplus_v = jnp.maximum(pre, 0.0) + jnp.log1p(jnp.exp(-jnp.abs(pre)))
    out_ref[...] = jnp.where(row == 0, tanh_v, softplus_v).astype(out_ref.dtype)


def pack_params(raw_params, weight_dtype=jnp.bfloat16, head_rows=HEAD_ROWS):
    """Pack the 5 Linear layers into kernel parameters.

    Fuses the two (fc3, 1) mu/var weights into one (head_rows, fc3) row block
    (row 0 = mu, row 1 = var, rest zero) plus a (head_rows, 1) bias column.
    Base-layer weights are cast to `weight_dtype` (bf16 default -> native MXU
    throughput on v5e/v6e/v7x); biases and the tiny head stay f32.
    """
    w1, b1, w2, b2, w3, b3, wmu, bmu, wvar, bvar = raw_params
    fc3 = w3.shape[1]
    wh = (jnp.zeros((head_rows, fc3), jnp.float32)
          .at[0, :].set(wmu[:, 0])
          .at[1, :].set(wvar[:, 0]))
    bh = (jnp.zeros((head_rows, 1), jnp.float32)
          .at[0, 0].set(bmu[0, 0])
          .at[1, 0].set(bvar[0, 0]))
    cast = lambda w: w.astype(weight_dtype)
    return (cast(w1), b1.astype(jnp.float32),
            cast(w2), b2.astype(jnp.float32),
            cast(w3), b3.astype(jnp.float32),
            wh, bh)


@functools.partial(jax.jit, static_argnames=("block_b",))
def actor_forward(x, packed, *, block_b=4096):
    """x: (B, input_dim) f32.  Returns (mu, var), squeezed like torch."""
    w1, b1, w2, b2, w3, b3, wh, bh = packed
    B, in_dim = x.shape
    fc1, fc2, fc3 = w1.shape[1], w2.shape[1], w3.shape[1]
    hr = wh.shape[0]

    # --- batch tiling -------------------------------------------------------
    # Batch sits on the lane axis of the (hr, B) output, so tiles are
    # multiples of 128.  Balance tiles across the grid (instead of padding up
    # to a fixed TB) and keep >= 2 grid steps when the batch is large enough
    # so both v7x TensorCores are used.
    n_tiles = max(1, _cdiv(B, block_b))
    if B >= 2 * LANE:
        n_tiles = max(n_tiles, 2)
    TB = _round_up(_cdiv(B, n_tiles), LANE)
    Bp = _round_up(B, TB)
    if Bp != B:
        x = jnp.pad(x, ((0, Bp - B), (0, 0)))
    grid = (Bp // TB,)

    flops = 2 * Bp * (in_dim * fc1 + fc1 * fc2 + fc2 * fc3 + fc3 * hr)
    transcendentals = 3 * Bp * hr  # tanh + exp + log1p over the (hr, Bp) slab
    bytes_accessed = int(
        Bp * in_dim * x.dtype.itemsize
        + sum(int(np.prod(p.shape)) * p.dtype.itemsize for p in packed)
        + hr * Bp * 4)

    # Weights/biases: constant block index -> fetched once, VMEM-resident.
    resident = lambda shape: pl.BlockSpec(shape, lambda i: (0, 0))

    out = pl.pallas_call(
        actor_kernel,
        out_shape=jax.ShapeDtypeStruct((hr, Bp), jnp.float32),
        grid=grid,
        in_specs=[
            pl.BlockSpec((TB, in_dim), lambda i: (i, 0)),  # x: tiled on batch
            resident(w1.shape), resident(b1.shape),
            resident(w2.shape), resident(b2.shape),
            resident(w3.shape), resident(b3.shape),
            resident(wh.shape), resident(bh.shape),
        ],
        # lane-dense (hr, TB) output tile, batch on lanes
        out_specs=pl.BlockSpec((hr, TB), lambda i: (0, i)),
        compiler_params=pltpu.CompilerParams(
            dimension_semantics=("parallel",),
            # ~14 MiB live at TB=4096; 32 MiB clears v5e's 16 MiB scoped
            # default and stays under v7x's 64 MiB physical per-TC.
            vmem_limit_bytes=32 * 1024 * 1024),
        cost_estimate=pl.CostEstimate(
            flops=flops,
            transcendentals=transcendentals,
            bytes_accessed=bytes_accessed),
    )(x, w1, b1, w2, b2, w3, b3, wh, bh)

    # torch.squeeze on (B, 1): (B,) for B > 1, scalar for B == 1.
    mu = jnp.squeeze(out[0, :B])
    var = jnp.squeeze(out[1, :B])
    return mu, var


def init_linear(key, fan_in, fan_out):
    """nn.Linear default init: U(-1/sqrt(fan_in), +1/sqrt(fan_in))."""
    kw, kb = jax.random.split(key)
    bound = 1.0 / np.sqrt(fan_in)
    w = jax.random.uniform(kw, (fan_in, fan_out), jnp.float32, -bound, bound)
    b = jax.random.uniform(kb, (1, fan_out), jnp.float32, -bound, bound)
    return w, b


def reference_forward(x, raw_params):
    (w1, b1, w2, b2, w3, b3, wmu, bmu, wvar, bvar) = raw_params
    h = jnp.maximum(x @ w1 + b1, 0.0)
    h = jnp.maximum(h @ w2 + b2, 0.0)
    h = jnp.maximum(h @ w3 + b3, 0.0)
    mu = jnp.tanh(h @ wmu + bmu)
    var = jax.nn.softplus(h @ wvar + bvar)
    return jnp.squeeze(mu), jnp.squeeze(var)


if __name__ == "__main__":
    # Shapes consistent with the module: input_dims=(16,), fc1=256, fc2=256, fc3=128
    batch = 8
    input_dim = 16
    fc1, fc2, fc3 = 256, 256, 128

    key = jax.random.PRNGKey(0)
    kx, k1, k2, k3, kmu, kvar = jax.random.split(key, 6)

    x = jax.random.normal(kx, (batch, input_dim), jnp.float32)

    w1, b1 = init_linear(k1, input_dim, fc1)
    w2, b2 = init_linear(k2, fc1, fc2)
    w3, b3 = init_linear(k3, fc2, fc3)
    wmu, bmu = init_linear(kmu, fc3, 1)
    wvar, bvar = init_linear(kvar, fc3, 1)

    raw_params = (w1, b1, w2, b2, w3, b3, wmu, bmu, wvar, bvar)
    mu_ref, var_ref = reference_forward(x, raw_params)

    # Exact-parity path (f32 matmul operands) -- tight tolerance vs reference.
    packed_f32 = pack_params(raw_params, weight_dtype=jnp.float32)
    mu, var = actor_forward(x, packed_f32)
    jax.block_until_ready((mu, var))
    np.testing.assert_allclose(np.asarray(mu), np.asarray(mu_ref), rtol=1e-5, atol=1e-5)
    np.testing.assert_allclose(np.asarray(var), np.asarray(var_ref), rtol=1e-5, atol=1e-5)

    # Production default path (bf16 MXU operands, f32 accumulation + epilogue).
    packed_bf16 = pack_params(raw_params)
    mu_b, var_b = actor_forward(x, packed_bf16)
    jax.block_until_ready((mu_b, var_b))
    np.testing.assert_allclose(np.asarray(mu_b), np.asarray(mu_ref), rtol=5e-2, atol=5e-2)
    np.testing.assert_allclose(np.asarray(var_b), np.asarray(var_ref), rtol=5e-2, atol=5e-2)

    print("KERNEL_OK")
</pallas_src>

<mosaic_0001>
module attributes {stable_mosaic.version = 11 : i64} {
  func.func @actor_kernel(%arg0: i32, %arg1: memref<128x16xf32, #tpu.memory_space<vmem>>, %arg2: memref<16x256xf32, #tpu.memory_space<vmem>>, %arg3: memref<1x256xf32, #tpu.memory_space<vmem>>, %arg4: memref<256x256xf32, #tpu.memory_space<vmem>>, %arg5: memref<1x256xf32, #tpu.memory_space<vmem>>, %arg6: memref<256x128xf32, #tpu.memory_space<vmem>>, %arg7: memref<1x128xf32, #tpu.memory_space<vmem>>, %arg8: memref<8x128xf32, #tpu.memory_space<vmem>>, %arg9: memref<8x1xf32, #tpu.memory_space<vmem>>, %arg10: memref<8x128xf32, #tpu.memory_space<vmem>>) attributes {dimension_semantics = [#tpu.dimension_semantics<parallel>], iteration_bounds = array<i64: 1>, scalar_prefetch = 0 : i64, scratch_operands = 0 : i64, tpu.core_type = #tpu.core_type<tc>, window_params = [{transform_indices = @transform_0, window_bounds = array<i64: 128, 16>}, {pipeline_mode = #tpu.pipeline_mode<synchronous>, transform_indices = @transform_1, window_bounds = array<i64: 16, 256>}, {pipeline_mode = #tpu.pipeline_mode<synchronous>, transform_indices = @transform_2, window_bounds = array<i64: 1, 256>}, {pipeline_mode = #tpu.pipeline_mode<synchronous>, transform_indices = @transform_3, window_bounds = array<i64: 256, 256>}, {pipeline_mode = #tpu.pipeline_mode<synchronous>, transform_indices = @transform_4, window_bounds = array<i64: 1, 256>}, {pipeline_mode = #tpu.pipeline_mode<synchronous>, transform_indices = @transform_5, window_bounds = array<i64: 256, 128>}, {pipeline_mode = #tpu.pipeline_mode<synchronous>, transform_indices = @transform_6, window_bounds = array<i64: 1, 128>}, {pipeline_mode = #tpu.pipeline_mode<synchronous>, transform_indices = @transform_7, window_bounds = array<i64: 8, 128>}, {pipeline_mode = #tpu.pipeline_mode<synchronous>, transform_indices = @transform_8, window_bounds = array<i64: 8, 1>}, {transform_indices = @transform_9, window_bounds = array<i64: 8, 128>}]} {
    %c0 = arith.constant 0 : index
    %c0_0 = arith.constant 0 : index
    %0 = vector.load %arg1[%c0, %c0_0] : memref<128x16xf32, #tpu.memory_space<vmem>>, vector<128x16xf32>
    %c0_1 = arith.constant 0 : index
    %c0_2 = arith.constant 0 : index
    %1 = vector.load %arg2[%c0_1, %c0_2] : memref<16x256xf32, #tpu.memory_space<vmem>>, vector<16x256xf32>
    %cst = arith.constant dense<0.000000e+00> : vector<128x256xf32>
    %2 = tpu.matmul %0, %1, %cst {dimension_numbers = #tpu.dot_dimension_numbers<[1], [0], [0], [1], [0, 0, 1, 1], [], []>} : vector<128x16xf32>, vector<16x256xf32>, vector<128x256xf32> -> vector<128x256xf32>
    %c0_3 = arith.constant 0 : index
    %c0_4 = arith.constant 0 : index
    %3 = vector.load %arg3[%c0_3, %c0_4] : memref<1x256xf32, #tpu.memory_space<vmem>>, vector<1x256xf32>
    %4 = vector.broadcast %3 : vector<1x256xf32> to vector<128x256xf32>
    %5 = arith.addf %2, %4 : vector<128x256xf32>
    %cst_5 = arith.constant 0.000000e+00 : f32
    %6 = vector.broadcast %cst_5 : f32 to vector<128x256xf32>
    %7 = arith.maximumf %5, %6 : vector<128x256xf32>
    %c0_6 = arith.constant 0 : index
    %c0_7 = arith.constant 0 : index
    %8 = vector.load %arg4[%c0_6, %c0_7] : memref<256x256xf32, #tpu.memory_space<vmem>>, vector<256x256xf32>
    %cst_8 = arith.constant dense<0.000000e+00> : vector<128x256xf32>
    %9 = tpu.matmul %7, %8, %cst_8 {dimension_numbers = #tpu.dot_dimension_numbers<[1], [0], [0], [1], [0, 0, 1, 1], [], []>} : vector<128x256xf32>, vector<256x256xf32>, vector<128x256xf32> -> vector<128x256xf32>
    %c0_9 = arith.constant 0 : index
    %c0_10 = arith.constant 0 : index
    %10 = vector.load %arg5[%c0_9, %c0_10] : memref<1x256xf32, #tpu.memory_space<vmem>>, vector<1x256xf32>
    %11 = vector.broadcast %10 : vector<1x256xf32> to vector<128x256xf32>
    %12 = arith.addf %9, %11 : vector<128x256xf32>
    %cst_11 = arith.constant 0.000000e+00 : f32
    %13 = vector.broadcast %cst_11 : f32 to vector<128x256xf32>
    %14 = arith.maximumf %12, %13 : vector<128x256xf32>
    %c0_12 = arith.constant 0 : index
    %c0_13 = arith.constant 0 : index
    %15 = vector.load %arg6[%c0_12, %c0_13] : memref<256x128xf32, #tpu.memory_space<vmem>>, vector<256x128xf32>
    %cst_14 = arith.constant dense<0.000000e+00> : vector<128x128xf32>
    %16 = tpu.matmul %14, %15, %cst_14 {dimension_numbers = #tpu.dot_dimension_numbers<[1], [0], [0], [1], [0, 0, 1, 1], [], []>} : vector<128x256xf32>, vector<256x128xf32>, vector<128x128xf32> -> vector<128x128xf32>
    %c0_15 = arith.constant 0 : index
    %c0_16 = arith.constant 0 : index
    %17 = vector.load %arg7[%c0_15, %c0_16] : memref<1x128xf32, #tpu.memory_space<vmem>>, vector<1x128xf32>
    %18 = vector.broadcast %17 : vector<1x128xf32> to vector<128x128xf32>
    %19 = arith.addf %16, %18 : vector<128x128xf32>
    %cst_17 = arith.constant 0.000000e+00 : f32
    %20 = vector.broadcast %cst_17 : f32 to vector<128x128xf32>
    %21 = arith.maximumf %19, %20 : vector<128x128xf32>
    %c0_18 = arith.constant 0 : index
    %c0_19 = arith.constant 0 : index
    %22 = vector.load %arg8[%c0_18, %c0_19] : memref<8x128xf32, #tpu.memory_space<vmem>>, vector<8x128xf32>
    %cst_20 = arith.constant dense<0.000000e+00> : vector<8x128xf32>
    %23 = tpu.matmul %22, %21, %cst_20 {dimension_numbers = #tpu.dot_dimension_numbers<[1], [1], [0], [0], [0, 0, 1, 0], [], []>} : vector<8x128xf32>, vector<128x128xf32>, vector<8x128xf32> -> vector<8x128xf32>
    %c0_21 = arith.constant 0 : index
    %c0_22 = arith.constant 0 : index
    %24 = vector.load %arg9[%c0_21, %c0_22] : memref<8x1xf32, #tpu.memory_space<vmem>>, vector<8x1xf32>
    %25 = vector.broadcast %24 : vector<8x1xf32> to vector<8x128xf32>
    %26 = arith.addf %23, %25 : vector<8x128xf32>
    %27 = tpu.iota {dimensions = array<i32: 0>} : vector<8x128xi32>
    %28 = math.tanh %26 : vector<8x128xf32>
    %cst_23 = arith.constant 0.000000e+00 : f32
    %29 = vector.broadcast %cst_23 : f32 to vector<8x128xf32>
    %30 = arith.maximumf %26, %29 : vector<8x128xf32>
    %31 = math.absf %26 : vector<8x128xf32>
    %cst_24 = arith.constant 0.000000e+00 : f32
    %32 = vector.broadcast %cst_24 : f32 to vector<8x128xf32>
    %33 = arith.subf %32, %31 : vector<8x128xf32>
    %34 = math.exp %33 : vector<8x128xf32>
    %35 = math.log1p %34 : vector<8x128xf32>
    %36 = arith.addf %30, %35 : vector<8x128xf32>
    %c0_i32 = arith.constant 0 : i32
    %37 = vector.broadcast %c0_i32 : i32 to vector<8x128xi32>
    %38 = arith.cmpi eq, %27, %37 : vector<8x128xi32>
    %39 = arith.select %38, %28, %36 : vector<8x128xi1>, vector<8x128xf32>
    %c0_25 = arith.constant 0 : index
    %c0_26 = arith.constant 0 : index
    %40 = vector.load %arg10[%c0_25, %c0_26] : memref<8x128xf32, #tpu.memory_space<vmem>>, vector<8x128xf32>
    tpu.vector_store %arg10[%c0_25, %c0_26], %39 {strides = array<i32>} : memref<8x128xf32, #tpu.memory_space<vmem>>, vector<8x128xf32>,
    return
  }
  func.func @transform_0(%arg0: i32) -> (i32, i32) {
    %c0_i32 = arith.constant 0 : i32
    %c0_i32_0 = arith.constant 0 : i32
    return %arg0, %c0_i32 : i32, i32
  }
  func.func @transform_1(%arg0: i32) -> (i32, i32) {
    %c0_i32 = arith.constant 0 : i32
    %c0_i32_0 = arith.constant 0 : i32
    %c0_i32_1 = arith.constant 0 : i32
    return %c0_i32, %c0_i32_0 : i32, i32
  }
  func.func @transform_2(%arg0: i32) -> (i32, i32) {
    %c0_i32 = arith.constant 0 : i32
    %c0_i32_0 = arith.constant 0 : i32
    %c0_i32_1 = arith.constant 0 : i32
    return %c0_i32, %c0_i32_0 : i32, i32
  }
  func.func @transform_3(%arg0: i32) -> (i32, i32) {
    %c0_i32 = arith.constant 0 : i32
    %c0_i32_0 = arith.constant 0 : i32
    %c0_i32_1 = arith.constant 0 : i32
    return %c0_i32, %c0_i32_0 : i32, i32
  }
  func.func @transform_4(%arg0: i32) -> (i32, i32) {
    %c0_i32 = arith.constant 0 : i32
    %c0_i32_0 = arith.constant 0 : i32
    %c0_i32_1 = arith.constant 0 : i32
    return %c0_i32, %c0_i32_0 : i32, i32
  }
  func.func @transform_5(%arg0: i32) -> (i32, i32) {
    %c0_i32 = arith.constant 0 : i32
    %c0_i32_0 = arith.constant 0 : i32
    %c0_i32_1 = arith.constant 0 : i32
    return %c0_i32, %c0_i32_0 : i32, i32
  }
  func.func @transform_6(%arg0: i32) -> (i32, i32) {
    %c0_i32 = arith.constant 0 : i32
    %c0_i32_0 = arith.constant 0 : i32
    %c0_i32_1 = arith.constant 0 : i32
    return %c0_i32, %c0_i32_0 : i32, i32
  }
  func.func @transform_7(%arg0: i32) -> (i32, i32) {
    %c0_i32 = arith.constant 0 : i32
    %c0_i32_0 = arith.constant 0 : i32
    %c0_i32_1 = arith.constant 0 : i32
    return %c0_i32, %c0_i32_0 : i32, i32
  }
  func.func @transform_8(%arg0: i32) -> (i32, i32) {
    %c0_i32 = arith.constant 0 : i32
    %c0_i32_0 = arith.constant 0 : i32
    %c0_i32_1 = arith.constant 0 : i32
    return %c0_i32, %c0_i32_0 : i32, i32
  }
  func.func @transform_9(%arg0: i32) -> (i32, i32) {
    %c0_i32 = arith.constant 0 : i32
    %c0_i32_0 = arith.constant 0 : i32
    return %c0_i32, %arg0 : i32, i32
  }
}

</mosaic_0001>

<llo_original>
// kernel: actor_forward.1
$region0: #{actor_forward.1}
  #allocation0 [shape = 'u32[]', space=smem, size = 0x4, offset = 0x4, fixed_abs, tag = 'smem constant byte address 0x4 - core index']
  #allocation1 [shape = 'u32[144,128]{1,0:T(1,128)}', space=vmem, size = 0x12000, scoped, tag = 'internal scratch']
  %s0 = inlined_call_operand.vmem [shape: f32[128,16], index: 0, kind: input, shape index: {}]
  %s1 = inlined_call_operand.vmem [shape: f32[16,256], index: 1, kind: input, shape index: {}]
  %s2 = inlined_call_operand.vmem [shape: f32[1,256], index: 2, kind: input, shape index: {}]
  %s3 = inlined_call_operand.hbm [shape: f32[256,256], index: 3, kind: input, shape index: {}]
  %s4 = inlined_call_operand.vmem [shape: f32[1,256], index: 4, kind: input, shape index: {}]
  %s5 = inlined_call_operand.hbm [shape: f32[256,128], index: 5, kind: input, shape index: {}]
  %s6 = inlined_call_operand.vmem [shape: f32[1,128], index: 6, kind: input, shape index: {}]
  %s7 = inlined_call_operand.vmem [shape: f32[8,128], index: 7, kind: input, shape index: {}]
  %s8 = inlined_call_operand.vmem [shape: f32[8,1], index: 8, kind: input, shape index: {}]
  %s9 = inlined_call_operand.vmem [shape: f32[8,128], index: 9, kind: output, shape index: {}]
  %s10 = sld [smem:[#allocation0]]
  $region54: #{actor_forward.1} parent=0
    _
  %s12 = ssub.s32 1, %s10
  %s13 = scalar_select 0, %s12, %s10
  $region1: #{actor_forward.1} parent=0
    #allocation2 [shape = 'u8[262144]{0}', space=vmem, size = 0x40000, scoped, tag = 'input window, operand 3, single buffered']
    #allocation3 [shape = 's32[1]{0}', space=sflag, size = 0x4, scoped, tag = 'scoped memory for actor_forward.1']
    #allocation4 [shape = 'u8[131072]{0}', space=vmem, size = 0x20000, scoped, tag = 'input window, operand 5, single buffered']
    #allocation5 [shape = 's32[1]{0}', space=sflag, size = 0x4, scoped, tag = 'scoped memory for actor_forward.1']
    %14 = vsyncpa [#allocation3], 0
    %15 = vsyncpa [#allocation5], 0
    // Predicated region
    $region2: #{actor_forward.1} parent=1 // pred_check
      _
    $region3: #{actor_forward.1} parent=1 // pred_check_branch
      %17 = sbr.rel (0) target = $region5
    $region4: #{actor_forward.1} parent=1 // pred_region
      _
    $region5: #{actor_forward.1} parent=1 // pred_fallthru
      _
    // Predicated region
    $region6: #{actor_forward.1} parent=1 // pred_check
      _
    $region7: #{actor_forward.1} parent=1 // pred_check_branch
      %19 = sbr.rel (0) target = $region9
    $region8: #{actor_forward.1} parent=1 // pred_region
      _
    $region9: #{actor_forward.1} parent=1 // pred_fallthru
      _
    // Predicated region
    $region10: #{actor_forward.1} parent=1 // pred_check
      _
    $region11: #{actor_forward.1} parent=1 // pred_check_branch
      %21 = sbr.rel (0) target = $region13
    $region12: #{actor_forward.1} parent=1 // pred_region
      _
    $region13: #{actor_forward.1} parent=1 // pred_fallthru
      _
    // Predicated region
    $region14: #{actor_forward.1} parent=1 // pred_check
      _
    $region15: #{actor_forward.1} parent=1 // pred_check_branch
      %23 = sbr.rel (0) target = $region17
    $region16: #{actor_forward.1} parent=1 // pred_region
      %s25 = ssub.s32 8192, 8192
      %26 = vsyncadd [#allocation3], %s25
      %s27 = sshll.u32 [#allocation2], 4
      %s28 = int_to_ptr.vmem [resolvable:$true] %s27
      %33 = dma.hbm_to_vmem [thread:$0]  %s3, 8192, %s28, [#allocation3], 256, 256, 16
    $region17: #{actor_forward.1} parent=1 // pred_fallthru
      _
    // Predicated region
    $region18: #{actor_forward.1} parent=1 // pred_check
      _
    $region19: #{actor_forward.1} parent=1 // pred_check_branch
      %35 = sbr.rel (0) target = $region21
    $region20: #{actor_forward.1} parent=1 // pred_region
      _
    $region21: #{actor_forward.1} parent=1 // pred_fallthru
      _
    // Predicated region
    $region22: #{actor_forward.1} parent=1 // pred_check
      _
    $region23: #{actor_forward.1} parent=1 // pred_check_branch
      %37 = sbr.rel (0) target = $region25
    $region24: #{actor_forward.1} parent=1 // pred_region
      %s39 = ssub.s32 4096, 4096
      %40 = vsyncadd [#allocation5], %s39
      %s41 = sshll.u32 [#allocation4], 4
      %s42 = int_to_ptr.vmem [resolvable:$true] %s41
      %47 = dma.hbm_to_vmem [thread:$0]  %s5, 4096, %s42, [#allocation5], 128, 128, 8
    $region25: #{actor_forward.1} parent=1 // pred_fallthru
      _
    // Predicated region
    $region26: #{actor_forward.1} parent=1 // pred_check
      _
    $region27: #{actor_forward.1} parent=1 // pred_check_branch
      %49 = sbr.rel (0) target = $region29
    $region28: #{actor_forward.1} parent=1 // pred_region
      _
    $region29: #{actor_forward.1} parent=1 // pred_fallthru
      _
    // Predicated region
    $region30: #{actor_forward.1} parent=1 // pred_check
      _
    $region31: #{actor_forward.1} parent=1 // pred_check_branch
      %51 = sbr.rel (0) target = $region33
    $region32: #{actor_forward.1} parent=1 // pred_region
      _
    $region33: #{actor_forward.1} parent=1 // pred_fallthru
      _
    // Predicated region
    $region34: #{actor_forward.1} parent=1 // pred_check
      _
    $region35: #{actor_forward.1} parent=1 // pred_check_branch
      %53 = sbr.rel (0) target = $region37
    $region36: #{actor_forward.1} parent=1 // pred_region
      _
    $region37: #{actor_forward.1} parent=1 // pred_fallthru
      _
    // Predicated region
    $region38: #{actor_forward.1} parent=1 // pred_check
      _
    $region39: #{actor_forward.1} parent=1 // pred_check_branch
      %55 = sbr.rel (0) target = $region41
    $region40: #{actor_forward.1} parent=1 // pred_region
      %56 = dma.done [#allocation3], 8192
    $region41: #{actor_forward.1} parent=1 // pred_fallthru
      _
    // Predicated region
    $region42: #{actor_forward.1} parent=1 // pred_check
      _
    $region43: #{actor_forward.1} parent=1 // pred_check_branch
      %58 = sbr.rel (0) target = $region45
    $region44: #{actor_forward.1} parent=1 // pred_region
      %59 = dma.done [#allocation5], 4096
    $region45: #{actor_forward.1} parent=1 // pred_fallthru
      _
    %v60 = vld [vmem:[%s0] sm:$0xff]
    %v61 = vld [vmem:[%s0 + $0x8] sm:$0xff]
    %v62 = vld [vmem:[%s0 + $0x10] sm:$0xff]
    %v63 = vld [vmem:[%s0 + $0x18] sm:$0xff]
    %v64 = vld [vmem:[%s0 + $0x20] sm:$0xff]
    %v65 = vld [vmem:[%s0 + $0x28] sm:$0xff]
    %v66 = vld [vmem:[%s0 + $0x30] sm:$0xff]
    %v67 = vld [vmem:[%s0 + $0x38] sm:$0xff]
    %v68 = vld [vmem:[%s0 + $0x40] sm:$0xff]
    %v69 = vld [vmem:[%s0 + $0x48] sm:$0xff]
    %v70 = vld [vmem:[%s0 + $0x50] sm:$0xff]
    %v71 = vld [vmem:[%s0 + $0x58] sm:$0xff]
    %v72 = vld [vmem:[%s0 + $0x60] sm:$0xff]
    %v73 = vld [vmem:[%s0 + $0x68] sm:$0xff]
    %v74 = vld [vmem:[%s0 + $0x70] sm:$0xff]
    %v75 = vld [vmem:[%s0 + $0x78] sm:$0xff]
    %v76 = vld [vmem:[%s1] sm:$0xff]
    %v77 = vld [vmem:[%s1 + $0x8] sm:$0xff]
    %v78 = vld [vmem:[%s1 + $0x10] sm:$0xff]
    %v79 = vld [vmem:[%s1 + $0x18] sm:$0xff]
    %v80 = vld [vmem:[%s2] sm:$0x3]
    %v82 = vlaneseq
    %v83 = vshrl.u32 %v82, 7
    %v84 = vsub.s32 0, %v83
    %v85 = vrot.slane %v80, %v84
    %v86 = vlaneseq
    %v87 = vshrl.u32 %v86, 7
    %v88 = vsub.s32 1, %v87
    %v89 = vrot.slane %v80, %v88
    %vm92 = vcmask 130048
    %v94 = vsel %vm92, %v60, 0
    %v97 = vsel %vm92, %v61, 0
    %v100 = vsel %vm92, %v62, 0
    %v103 = vsel %vm92, %v63, 0
    %v106 = vsel %vm92, %v64, 0
    %v109 = vsel %vm92, %v65, 0
    %v112 = vsel %vm92, %v66, 0
    %v115 = vsel %vm92, %v67, 0
    %v118 = vsel %vm92, %v68, 0
    %v121 = vsel %vm92, %v69, 0
    %v124 = vsel %vm92, %v70, 0
    %v127 = vsel %vm92, %v71, 0
    %v130 = vsel %vm92, %v72, 0
    %v133 = vsel %vm92, %v73, 0
    %v136 = vsel %vm92, %v74, 0
    %v139 = vsel %vm92, %v75, 0
    %141 = vmatprep.subr.mxu0 0.0
    %142 = vmatpush1.msra.mxu0 0.0
    %143 = vmatprep.subr.mxu0 0.0
    %144 = vmatpush1.msra.mxu0 0.0
    %145 = vmatprep.subr.mxu0 0.0
    %146 = vmatpush1.msra.mxu0 0.0
    %147 = vmatprep.subr.mxu0 0.0
    %148 = vmatpush1.msra.mxu0 0.0
    %149 = vmatprep.subr.mxu0 0.0
    %150 = vmatpush1.msra.mxu0 0.0
    %151 = vmatprep.subr.mxu0 0.0
    %152 = vmatpush1.msra.mxu0 0.0
    %153 = vmatprep.subr.mxu0 0.0
    %154 = vmatpush1.msra.mxu0 0.0
    %155 = vmatprep.subr.mxu0 0.0
    %156 = vmatpush1.msra.mxu0 0.0
    %157 = vmatprep.subr.mxu0 0.0
    %158 = vmatpush1.msra.mxu0 0.0
    %159 = vmatprep.subr.mxu0 0.0
    %160 = vmatpush1.msra.mxu0 0.0
    %161 = vmatprep.subr.mxu0 0.0
    %162 = vmatpush1.msra.mxu0 0.0
    %163 = vmatprep.subr.mxu0 0.0
    %164 = vmatpush1.msra.mxu0 0.0
    %165 = vmatprep.subr.mxu0 0.0
    %166 = vmatpush1.msra.mxu0 0.0
    %167 = vmatprep.subr.mxu0 0.0
    %168 = vmatpush1.msra.mxu0 0.0
    %169 = vmatprep.subr.mxu0 %v79
    %170 = vmatpush1.msra.mxu0 %v78
    %171 = vmatprep.subr.mxu0 %v77
    %172 = vmatpush1.msra.mxu0 %v76
    %173 = vmatprep.subr.mxu0 0.0
    %174 = vmatpush2.msra.mxu0 0.0
    %175 = vmatprep.subr.mxu0 0.0
    %176 = vmatpush2.msra.mxu0 0.0
    %177 = vmatprep.subr.mxu0 0.0
    %178 = vmatpush2.msra.mxu0 0.0
    %179 = vmatprep.subr.mxu0 0.0
    %180 = vmatpush2.msra.mxu0 0.0
    %181 = vmatprep.subr.mxu0 0.0
    %182 = vmatpush2.msra.mxu0 0.0
    %183 = vmatprep.subr.mxu0 0.0
    %184 = vmatpush2.msra.mxu0 0.0
    %185 = vmatprep.subr.mxu0 0.0
    %186 = vmatpush2.msra.mxu0 0.0
    %187 = vmatprep.subr.mxu0 0.0
    %188 = vmatpush2.msra.mxu0 0.0
    %189 = vmatprep.subr.mxu0 0.0
    %190 = vmatpush2.msra.mxu0 0.0
    %191 = vmatprep.subr.mxu0 0.0
    %192 = vmatpush2.msra.mxu0 0.0
    %193 = vmatprep.subr.mxu0 0.0
    %194 = vmatpush2.msra.mxu0 0.0
    %195 = vmatprep.subr.mxu0 0.0
    %196 = vmatpush2.msra.mxu0 0.0
    %197 = vmatprep.subr.mxu0 0.0
    %198 = vmatpush2.msra.mxu0 0.0
    %199 = vmatprep.subr.mxu0 0.0
    %200 = vmatpush2.msra.mxu0 0.0
    %201 = vmatprep.subr.mxu0 0.0
    %202 = vmatpush2.msra.mxu0 0.0
    %203 = vmatprep.subr.mxu0 0.0
    %204 = vmatpush2.msra.mxu0 0.0
    %205 = vmatprep.mubr.f32.mxu0 0.0
    %206 = vmatmul.mubr.f32.gmra.mxu0 %v94
    %v207 = vpop.f32.mrf.mxu0
    %v208 = vadd.f32 %v85, %v207
    %v209 = vpop.f32.mrf.mxu0
    %v210 = vadd.f32 %v89, %v209
    %211 = vmatprep.mubr.f32.mxu0 0.0
    %212 = vmatmul.mubr.f32.gmra.mxu0 %v97
    %v213 = vpop.f32.mrf.mxu0
    %v214 = vadd.f32 %v85, %v213
    %v215 = vpop.f32.mrf.mxu0
    %v216 = vadd.f32 %v89, %v215
    %217 = vmatprep.mubr.f32.mxu0 0.0
    %218 = vmatmul.mubr.f32.gmra.mxu0 %v100
    %v219 = vpop.f32.mrf.mxu0
    %v220 = vadd.f32 %v85, %v219
    %v221 = vpop.f32.mrf.mxu0
    %v222 = vadd.f32 %v89, %v221
    %223 = vmatprep.mubr.f32.mxu0 0.0
    %224 = vmatmul.mubr.f32.gmra.mxu0 %v103
    %v225 = vpop.f32.mrf.mxu0
    %v226 = vadd.f32 %v85, %v225
    %v227 = vpop.f32.mrf.mxu0
    %v228 = vadd.f32 %v89, %v227
    %229 = vmatprep.mubr.f32.mxu0 0.0
    %230 = vmatmul.mubr.f32.gmra.mxu0 %v106
    %v231 = vpop.f32.mrf.mxu0
    %v232 = vadd.f32 %v85, %v231
    %v233 = vpop.f32.mrf.mxu0
    %v234 = vadd.f32 %v89, %v233
    %235 = vmatprep.mubr.f32.mxu0 0.0
    %236 = vmatmul.mubr.f32.gmra.mxu0 %v109
    %v237 = vpop.f32.mrf.mxu0
    %v238 = vadd.f32 %v85, %v237
    %v239 = vpop.f32.mrf.mxu0
    %v240 = vadd.f32 %v89, %v239
    %241 = vmatprep.mubr.f32.mxu0 0.0
    %242 = vmatmul.mubr.f32.gmra.mxu0 %v112
    %v243 = vpop.f32.mrf.mxu0
    %v244 = vadd.f32 %v85, %v243
    %v245 = vpop.f32.mrf.mxu0
    %v246 = vadd.f32 %v89, %v245
    %247 = vmatprep.mubr.f32.mxu0 0.0
    %248 = vmatmul.mubr.f32.gmra.mxu0 %v115
    %v249 = vpop.f32.mrf.mxu0
    %v250 = vadd.f32 %v85, %v249
    %v251 = vpop.f32.mrf.mxu0
    %v252 = vadd.f32 %v89, %v251
    %253 = vmatprep.mubr.f32.mxu0 0.0
    %254 = vmatmul.mubr.f32.gmra.mxu0 %v118
    %v255 = vpop.f32.mrf.mxu0
    %v256 = vadd.f32 %v85, %v255
    %v257 = vpop.f32.mrf.mxu0
    %v258 = vadd.f32 %v89, %v257
    %259 = vmatprep.mubr.f32.mxu0 0.0
    %260 = vmatmul.mubr.f32.gmra.mxu0 %v121
    %v261 = vpop.f32.mrf.mxu0
    %v262 = vadd.f32 %v85, %v261
    %v263 = vpop.f32.mrf.mxu0
    %v264 = vadd.f32 %v89, %v263
    %265 = vmatprep.mubr.f32.mxu0 0.0
    %266 = vmatmul.mubr.f32.gmra.mxu0 %v124
    %v267 = vpop.f32.mrf.mxu0
    %v268 = vadd.f32 %v85, %v267
    %v269 = vpop.f32.mrf.mxu0
    %v270 = vadd.f32 %v89, %v269
    %271 = vmatprep.mubr.f32.mxu0 0.0
    %272 = vmatmul.mubr.f32.gmra.mxu0 %v127
    %v273 = vpop.f32.mrf.mxu0
    %v274 = vadd.f32 %v85, %v273
    %v275 = vpop.f32.mrf.mxu0
    %v276 = vadd.f32 %v89, %v275
    %277 = vmatprep.mubr.f32.mxu0 0.0
    %278 = vmatmul.mubr.f32.gmra.mxu0 %v130
    %v279 = vpop.f32.mrf.mxu0
    %v280 = vadd.f32 %v85, %v279
    %v281 = vpop.f32.mrf.mxu0
    %v282 = vadd.f32 %v89, %v281
    %283 = vmatprep.mubr.f32.mxu0 0.0
    %284 = vmatmul.mubr.f32.gmra.mxu0 %v133
    %v285 = vpop.f32.mrf.mxu0
    %v286 = vadd.f32 %v85, %v285
    %v287 = vpop.f32.mrf.mxu0
    %v288 = vadd.f32 %v89, %v287
    %289 = vmatprep.mubr.f32.mxu0 0.0
    %290 = vmatmul.mubr.f32.gmra.mxu0 %v136
    %v291 = vpop.f32.mrf.mxu0
    %v292 = vadd.f32 %v85, %v291
    %v293 = vpop.f32.mrf.mxu0
    %v294 = vadd.f32 %v89, %v293
    %295 = vmatprep.mubr.f32.mxu0 0.0
    %296 = vmatmul.mubr.f32.gmra.mxu0 %v139
    %v297 = vpop.f32.mrf.mxu0
    %v298 = vadd.f32 %v85, %v297
    %v299 = vpop.f32.mrf.mxu0
    %v300 = vadd.f32 %v89, %v299
    %301 = vdwg.mxu0
    %v302 = vmax.f32 %v208, 0.0
    %v303 = vmax.f32 %v210, 0.0
    %v304 = vmax.f32 %v214, 0.0
    %v305 = vmax.f32 %v216, 0.0
    %v306 = vmax.f32 %v220, 0.0
    %v307 = vmax.f32 %v222, 0.0
    %v308 = vmax.f32 %v226, 0.0
    %v309 = vmax.f32 %v228, 0.0
    %v310 = vmax.f32 %v232, 0.0
    %v311 = vmax.f32 %v234, 0.0
    %v312 = vmax.f32 %v238, 0.0
    %v313 = vmax.f32 %v240, 0.0
    %v314 = vmax.f32 %v244, 0.0
    %v315 = vmax.f32 %v246, 0.0
    %v316 = vmax.f32 %v250, 0.0
    %v317 = vmax.f32 %v252, 0.0
    %v318 = vmax.f32 %v256, 0.0
    %v319 = vmax.f32 %v258, 0.0
    %v320 = vmax.f32 %v262, 0.0
    %v321 = vmax.f32 %v264, 0.0
    %v322 = vmax.f32 %v268, 0.0
    %v323 = vmax.f32 %v270, 0.0
    %v324 = vmax.f32 %v274, 0.0
    %v325 = vmax.f32 %v276, 0.0
    %v326 = vmax.f32 %v280, 0.0
    %v327 = vmax.f32 %v282, 0.0
    %v328 = vmax.f32 %v286, 0.0
    %v329 = vmax.f32 %v288, 0.0
    %v330 = vmax.f32 %v292, 0.0
    %v331 = vmax.f32 %v294, 0.0
    %v332 = vmax.f32 %v298, 0.0
    %v333 = vmax.f32 %v300, 0.0
    %v334 = vld [vmem:[#allocation2] sm:$0xff]
    %v335 = vld [vmem:[#allocation2 + $0x8] sm:$0xff]
    %v336 = vld [vmem:[#allocation2 + $0x10] sm:$0xff]
    %v337 = vld [vmem:[#allocation2 + $0x18] sm:$0xff]
    %v338 = vld [vmem:[#allocation2 + $0x20] sm:$0xff]
    %v339 = vld [vmem:[#allocation2 + $0x28] sm:$0xff]
    %v340 = vld [vmem:[#allocation2 + $0x30] sm:$0xff]
    %v341 = vld [vmem:[#allocation2 + $0x38] sm:$0xff]
    %v342 = vld [vmem:[#allocation2 + $0x40] sm:$0xff]
    %v343 = vld [vmem:[#allocation2 + $0x48] sm:$0xff]
    %v344 = vld [vmem:[#allocation2 + $0x50] sm:$0xff]
    %v345 = vld [vmem:[#allocation2 + $0x58] sm:$0xff]
    %v346 = vld [vmem:[#allocation2 + $0x60] sm:$0xff]
    %v347 = vld [vmem:[#allocation2 + $0x68] sm:$0xff]
    %v348 = vld [vmem:[#allocation2 + $0x70] sm:$0xff]
    %v349 = vld [vmem:[#allocation2 + $0x78] sm:$0xff]
    %v350 = vld [vmem:[#allocation2 + $0x80] sm:$0xff]
    %v351 = vld [vmem:[#allocation2 + $0x88] sm:$0xff]
    %v352 = vld [vmem:[#allocation2 + $0x90] sm:$0xff]
    %v353 = vld [vmem:[#allocation2 + $0x98] sm:$0xff]
    %v354 = vld [vmem:[#allocation2 + $0xa0] sm:$0xff]
    %v355 = vld [vmem:[#allocation2 + $0xa8] sm:$0xff]
    %v356 = vld [vmem:[#allocation2 + $0xb0] sm:$0xff]
    %v357 = vld [vmem:[#allocation2 + $0xb8] sm:$0xff]
    %v358 = vld [vmem:[#allocation2 + $0xc0] sm:$0xff]
    %v359 = vld [vmem:[#allocation2 + $0xc8] sm:$0xff]
    %v360 = vld [vmem:[#allocation2 + $0xd0] sm:$0xff]
    %v361 = vld [vmem:[#allocation2 + $0xd8] sm:$0xff]
    %v362 = vld [vmem:[#allocation2 + $0xe0] sm:$0xff]
    %v363 = vld [vmem:[#allocation2 + $0xe8] sm:$0xff]
    %v364 = vld [vmem:[#allocation2 + $0xf0] sm:$0xff]
    %v365 = vld [vmem:[#allocation2 + $0xf8] sm:$0xff]
    %v366 = vld [vmem:[#allocation2 + $0x100] sm:$0xff]
    %v367 = vld [vmem:[#allocation2 + $0x108] sm:$0xff]
    %v368 = vld [vmem:[#allocation2 + $0x110] sm:$0xff]
    %v369 = vld [vmem:[#allocation2 + $0x118] sm:$0xff]
    %v370 = vld [vmem:[#allocation2 + $0x120] sm:$0xff]
    %v371 = vld [vmem:[#allocation2 + $0x128] sm:$0xff]
    %v372 = vld [vmem:[#allocation2 + $0x130] sm:$0xff]
    %v373 = vld [vmem:[#allocation2 + $0x138] sm:$0xff]
    %v374 = vld [vmem:[#allocation2 + $0x140] sm:$0xff]
    %v375 = vld [vmem:[#allocation2 + $0x148] sm:$0xff]
    %v376 = vld [vmem:[#allocation2 + $0x150] sm:$0xff]
    %v377 = vld [vmem:[#allocation2 + $0x158] sm:$0xff]
    %v378 = vld [vmem:[#allocation2 + $0x160] sm:$0xff]
    %v379 = vld [vmem:[#allocation2 + $0x168] sm:$0xff]
    %v380 = vld [vmem:[#allocation2 + $0x170] sm:$0xff]
    %v381 = vld [vmem:[#allocation2 + $0x178] sm:$0xff]
    %v382 = vld [vmem:[#allocation2 + $0x180] sm:$0xff]
    %v383 = vld [vmem:[#allocation2 + $0x188] sm:$0xff]
    %v384 = vld [vmem:[#allocation2 + $0x190] sm:$0xff]
    %v385 = vld [vmem:[#allocation2 + $0x198] sm:$0xff]
    %v386 = vld [vmem:[#allocation2 + $0x1a0] sm:$0xff]
    %v387 = vld [vmem:[#allocation2 + $0x1a8] sm:$0xff]
    %v388 = vld [vmem:[#allocation2 + $0x1b0] sm:$0xff]
    %v389 = vld [vmem:[#allocation2 + $0x1b8] sm:$0xff]
    %v390 = vld [vmem:[#allocation2 + $0x1c0] sm:$0xff]
    %v391 = vld [vmem:[#allocation2 + $0x1c8] sm:$0xff]
    %v392 = vld [vmem:[#allocation2 + $0x1d0] sm:$0xff]
    %v393 = vld [vmem:[#allocation2 + $0x1d8] sm:$0xff]
    %v394 = vld [vmem:[#allocation2 + $0x1e0] sm:$0xff]
    %v395 = vld [vmem:[#allocation2 + $0x1e8] sm:$0xff]
    %v396 = vld [vmem:[#allocation2 + $0x1f0] sm:$0xff]
    %v397 = vld [vmem:[#allocation2 + $0x1f8] sm:$0xff]
    %v398 = vld [vmem:[%s4] sm:$0x3]
    %v400 = vlaneseq
    %v401 = vshrl.u32 %v400, 7
    %v402 = vsub.s32 0, %v401
    %v403 = vrot.slane %v398, %v402
    %v404 = vlaneseq
    %v405 = vshrl.u32 %v404, 7
    %v406 = vsub.s32 1, %v405
    %v407 = vrot.slane %v398, %v406
    %410 = vmatprep.subr.mxu0 %v365
    %411 = vmatpush1.msra.mxu0 %v364
    %412 = vmatprep.subr.mxu0 %v363
    %413 = vmatpush1.msra.mxu0 %v362
    %414 = vmatprep.subr.mxu0 %v361
    %415 = vmatpush1.msra.mxu0 %v360
    %416 = vmatprep.subr.mxu0 %v359
    %417 = vmatpush1.msra.mxu0 %v358
    %418 = vmatprep.subr.mxu0 %v357
    %419 = vmatpush1.msra.mxu0 %v356
    %420 = vmatprep.subr.mxu0 %v355
    %421 = vmatpush1.msra.mxu0 %v354
    %422 = vmatprep.subr.mxu0 %v353
    %423 = vmatpush1.msra.mxu0 %v352
    %424 = vmatprep.subr.mxu0 %v351
    %425 = vmatpush1.msra.mxu0 %v350
    %426 = vmatprep.subr.mxu0 %v349
    %427 = vmatpush1.msra.mxu0 %v348
    %428 = vmatprep.subr.mxu0 %v347
    %429 = vmatpush1.msra.mxu0 %v346
    %430 = vmatprep.subr.mxu0 %v345
    %431 = vmatpush1.msra.mxu0 %v344
    %432 = vmatprep.subr.mxu0 %v343
    %433 = vmatpush1.msra.mxu0 %v342
    %434 = vmatprep.subr.mxu0 %v341
    %435 = vmatpush1.msra.mxu0 %v340
    %436 = vmatprep.subr.mxu0 %v339
    %437 = vmatpush1.msra.mxu0 %v338
    %438 = vmatprep.subr.mxu0 %v337
    %439 = vmatpush1.msra.mxu0 %v336
    %440 = vmatprep.subr.mxu0 %v335
    %441 = vmatpush1.msra.mxu0 %v334
    %442 = vmatprep.subr.mxu0 %v397
    %443 = vmatpush2.msra.mxu0 %v396
    %444 = vmatprep.subr.mxu0 %v395
    %445 = vmatpush2.msra.mxu0 %v394
    %446 = vmatprep.subr.mxu0 %v393
    %447 = vmatpush2.msra.mxu0 %v392
    %448 = vmatprep.subr.mxu0 %v391
    %449 = vmatpush2.msra.mxu0 %v390
    %450 = vmatprep.subr.mxu0 %v389
    %451 = vmatpush2.msra.mxu0 %v388
    %452 = vmatprep.subr.mxu0 %v387
    %453 = vmatpush2.msra.mxu0 %v386
    %454 = vmatprep.subr.mxu0 %v385
    %455 = vmatpush2.msra.mxu0 %v384
    %456 = vmatprep.subr.mxu0 %v383
    %457 = vmatpush2.msra.mxu0 %v382
    %458 = vmatprep.subr.mxu0 %v381
    %459 = vmatpush2.msra.mxu0 %v380
    %460 = vmatprep.subr.mxu0 %v379
    %461 = vmatpush2.msra.mxu0 %v378
    %462 = vmatprep.subr.mxu0 %v377
    %463 = vmatpush2.msra.mxu0 %v376
    %464 = vmatprep.subr.mxu0 %v375
    %465 = vmatpush2.msra.mxu0 %v374
    %466 = vmatprep.subr.mxu0 %v373
    %467 = vmatpush2.msra.mxu0 %v372
    %468 = vmatprep.subr.mxu0 %v371
    %469 = vmatpush2.msra.mxu0 %v370
    %470 = vmatprep.subr.mxu0 %v369
    %471 = vmatpush2.msra.mxu0 %v368
    %472 = vmatprep.subr.mxu0 %v367
    %473 = vmatpush2.msra.mxu0 %v366
    %474 = vmatprep.mubr.f32.mxu0 %v303
    %475 = vmatmul.mubr.f32.gmra.mxu0 %v302
    %v476 = vpop.f32.mrf.mxu0
    %v477 = vadd.f32 %v403, %v476
    %v478 = vpop.f32.mrf.mxu0
    %v479 = vadd.f32 %v407, %v478
    %480 = vmatprep.mubr.f32.mxu0 %v305
    %481 = vmatmul.mubr.f32.gmra.mxu0 %v304
    %v482 = vpop.f32.mrf.mxu0
    %v483 = vadd.f32 %v403, %v482
    %v484 = vpop.f32.mrf.mxu0
    %v485 = vadd.f32 %v407, %v484
    %486 = vmatprep.mubr.f32.mxu0 %v307
    %487 = vmatmul.mubr.f32.gmra.mxu0 %v306
    %v488 = vpop.f32.mrf.mxu0
    %v489 = vadd.f32 %v403, %v488
    %v490 = vpop.f32.mrf.mxu0
    %v491 = vadd.f32 %v407, %v490
    %492 = vmatprep.mubr.f32.mxu0 %v309
    %493 = vmatmul.mubr.f32.gmra.mxu0 %v308
    %v494 = vpop.f32.mrf.mxu0
    %v495 = vadd.f32 %v403, %v494
    %v496 = vpop.f32.mrf.mxu0
    %v497 = vadd.f32 %v407, %v496
    %498 = vmatprep.mubr.f32.mxu0 %v311
    %499 = vmatmul.mubr.f32.gmra.mxu0 %v310
    %v500 = vpop.f32.mrf.mxu0
    %v501 = vadd.f32 %v403, %v500
    %v502 = vpop.f32.mrf.mxu0
    %v503 = vadd.f32 %v407, %v502
    %504 = vmatprep.mubr.f32.mxu0 %v313
    %505 = vmatmul.mubr.f32.gmra.mxu0 %v312
    %v506 = vpop.f32.mrf.mxu0
    %v507 = vadd.f32 %v403, %v506
    %v508 = vpop.f32.mrf.mxu0
    %v509 = vadd.f32 %v407, %v508
    %510 = vmatprep.mubr.f32.mxu0 %v315
    %511 = vmatmul.mubr.f32.gmra.mxu0 %v314
    %v512 = vpop.f32.mrf.mxu0
    %v513 = vadd.f32 %v403, %v512
    %v514 = vpop.f32.mrf.mxu0
    %v515 = vadd.f32 %v407, %v514
    %516 = vmatprep.mubr.f32.mxu0 %v317
    %517 = vmatmul.mubr.f32.gmra.mxu0 %v316
    %v518 = vpop.f32.mrf.mxu0
    %v519 = vadd.f32 %v403, %v518
    %v520 = vpop.f32.mrf.mxu0
    %v521 = vadd.f32 %v407, %v520
    %522 = vmatprep.mubr.f32.mxu0 %v319
    %523 = vmatmul.mubr.f32.gmra.mxu0 %v318
    %v524 = vpop.f32.mrf.mxu0
    %v525 = vadd.f32 %v403, %v524
    %v526 = vpop.f32.mrf.mxu0
    %v527 = vadd.f32 %v407, %v526
    %528 = vmatprep.mubr.f32.mxu0 %v321
    %529 = vmatmul.mubr.f32.gmra.mxu0 %v320
    %v530 = vpop.f32.mrf.mxu0
    %v531 = vadd.f32 %v403, %v530
    %v532 = vpop.f32.mrf.mxu0
    %v533 = vadd.f32 %v407, %v532
    %534 = vmatprep.mubr.f32.mxu0 %v323
    %535 = vmatmul.mubr.f32.gmra.mxu0 %v322
    %v536 = vpop.f32.mrf.mxu0
    %v537 = vadd.f32 %v403, %v536
    %v538 = vpop.f32.mrf.mxu0
    %v539 = vadd.f32 %v407, %v538
    %540 = vmatprep.mubr.f32.mxu0 %v325
    %541 = vmatmul.mubr.f32.gmra.mxu0 %v324
    %v542 = vpop.f32.mrf.mxu0
    %v543 = vadd.f32 %v403, %v542
    %v544 = vpop.f32.mrf.mxu0
    %v545 = vadd.f32 %v407, %v544
    %546 = vmatprep.mubr.f32.mxu0 %v327
    %547 = vmatmul.mubr.f32.gmra.mxu0 %v326
    %v548 = vpop.f32.mrf.mxu0
    %v549 = vadd.f32 %v403, %v548
    %v550 = vpop.f32.mrf.mxu0
    %v551 = vadd.f32 %v407, %v550
    %552 = vmatprep.mubr.f32.mxu0 %v329
    %553 = vmatmul.mubr.f32.gmra.mxu0 %v328
    %v554 = vpop.f32.mrf.mxu0
    %v555 = vadd.f32 %v403, %v554
    %v556 = vpop.f32.mrf.mxu0
    %v557 = vadd.f32 %v407, %v556
    %558 = vmatprep.mubr.f32.mxu0 %v331
    %559 = vmatmul.mubr.f32.gmra.mxu0 %v330
    %v560 = vpop.f32.mrf.mxu0
    %v561 = vadd.f32 %v403, %v560
    %v562 = vpop.f32.mrf.mxu0
    %v563 = vadd.f32 %v407, %v562
    %564 = vmatprep.mubr.f32.mxu0 %v333
    %565 = vmatmul.mubr.f32.gmra.mxu0 %v332
    %v566 = vpop.f32.mrf.mxu0
    %v567 = vadd.f32 %v403, %v566
    %v568 = vpop.f32.mrf.mxu0
    %v569 = vadd.f32 %v407, %v568
    %570 = vdwg.mxu0
    %v571 = vmax.f32 %v477, 0.0
    %v572 = vmax.f32 %v479, 0.0
    %v573 = vmax.f32 %v483, 0.0
    %v574 = vmax.f32 %v485, 0.0
    %v575 = vmax.f32 %v489, 0.0
    %v576 = vmax.f32 %v491, 0.0
    %v577 = vmax.f32 %v495, 0.0
    %v578 = vmax.f32 %v497, 0.0
    %v579 = vmax.f32 %v501, 0.0
    %v580 = vmax.f32 %v503, 0.0
    %v581 = vmax.f32 %v507, 0.0
    %v582 = vmax.f32 %v509, 0.0
    %v583 = vmax.f32 %v513, 0.0
    %v584 = vmax.f32 %v515, 0.0
    %v585 = vmax.f32 %v519, 0.0
    %v586 = vmax.f32 %v521, 0.0
    %v587 = vmax.f32 %v525, 0.0
    %v588 = vmax.f32 %v527, 0.0
    %v589 = vmax.f32 %v531, 0.0
    %v590 = vmax.f32 %v533, 0.0
    %v591 = vmax.f32 %v537, 0.0
    %v592 = vmax.f32 %v539, 0.0
    %v593 = vmax.f32 %v543, 0.0
    %v594 = vmax.f32 %v545, 0.0
    %v595 = vmax.f32 %v549, 0.0
    %v596 = vmax.f32 %v551, 0.0
    %v597 = vmax.f32 %v555, 0.0
    %v598 = vmax.f32 %v557, 0.0
    %v599 = vmax.f32 %v561, 0.0
    %v600 = vmax.f32 %v563, 0.0
    %v601 = vmax.f32 %v567, 0.0
    %v602 = vmax.f32 %v569, 0.0
    %v603 = vld [vmem:[#allocation4] sm:$0xff]
    %v604 = vld [vmem:[#allocation4 + $0x8] sm:$0xff]
    %v605 = vld [vmem:[#allocation4 + $0x10] sm:$0xff]
    %v606 = vld [vmem:[#allocation4 + $0x18] sm:$0xff]
    %v607 = vld [vmem:[#allocation4 + $0x20] sm:$0xff]
    %v608 = vld [vmem:[#allocation4 + $0x28] sm:$0xff]
    %v609 = vld [vmem:[#allocation4 + $0x30] sm:$0xff]
    %v610 = vld [vmem:[#allocation4 + $0x38] sm:$0xff]
    %v611 = vld [vmem:[#allocation4 + $0x40] sm:$0xff]
    %v612 = vld [vmem:[#allocation4 + $0x48] sm:$0xff]
    %v613 = vld [vmem:[#allocation4 + $0x50] sm:$0xff]
    %v614 = vld [vmem:[#allocation4 + $0x58] sm:$0xff]
    %v615 = vld [vmem:[#allocation4 + $0x60] sm:$0xff]
    %v616 = vld [vmem:[#allocation4 + $0x68] sm:$0xff]
    %v617 = vld [vmem:[#allocation4 + $0x70] sm:$0xff]
    %v618 = vld [vmem:[#allocation4 + $0x78] sm:$0xff]
    %v619 = vld [vmem:[#allocation4 + $0x80] sm:$0xff]
    %v620 = vld [vmem:[#allocation4 + $0x88] sm:$0xff]
    %v621 = vld [vmem:[#allocation4 + $0x90] sm:$0xff]
    %v622 = vld [vmem:[#allocation4 + $0x98] sm:$0xff]
    %v623 = vld [vmem:[#allocation4 + $0xa0] sm:$0xff]
    %v624 = vld [vmem:[#allocation4 + $0xa8] sm:$0xff]
    %v625 = vld [vmem:[#allocation4 + $0xb0] sm:$0xff]
    %v626 = vld [vmem:[#allocation4 + $0xb8] sm:$0xff]
    %v627 = vld [vmem:[#allocation4 + $0xc0] sm:$0xff]
    %v628 = vld [vmem:[#allocation4 + $0xc8] sm:$0xff]
    %v629 = vld [vmem:[#allocation4 + $0xd0] sm:$0xff]
    %v630 = vld [vmem:[#allocation4 + $0xd8] sm:$0xff]
    %v631 = vld [vmem:[#allocation4 + $0xe0] sm:$0xff]
    %v632 = vld [vmem:[#allocation4 + $0xe8] sm:$0xff]
    %v633 = vld [vmem:[#allocation4 + $0xf0] sm:$0xff]
    %v634 = vld [vmem:[#allocation4 + $0xf8] sm:$0xff]
    %v635 = vld [vmem:[%s6] sm:$0x1]
    %v637 = vlaneseq
    %v638 = vshrl.u32 %v637, 7
    %v639 = vsub.s32 0, %v638
    %v640 = vrot.slane %v635, %v639
    %642 = vmatprep.subr.mxu0 0.0
    %643 = vmatpush1.msra.mxu0 %v618
    %644 = vmatprep.subr.mxu0 0.0
    %645 = vmatpush1.msra.mxu0 %v617
    %646 = vmatprep.subr.mxu0 0.0
    %647 = vmatpush1.msra.mxu0 %v616
    %648 = vmatprep.subr.mxu0 0.0
    %649 = vmatpush1.msra.mxu0 %v615
    %650 = vmatprep.subr.mxu0 0.0
    %651 = vmatpush1.msra.mxu0 %v614
    %652 = vmatprep.subr.mxu0 0.0
    %653 = vmatpush1.msra.mxu0 %v613
    %654 = vmatprep.subr.mxu0 0.0
    %655 = vmatpush1.msra.mxu0 %v612
    %656 = vmatprep.subr.mxu0 0.0
    %657 = vmatpush1.msra.mxu0 %v611
    %658 = vmatprep.subr.mxu0 0.0
    %659 = vmatpush1.msra.mxu0 %v610
    %660 = vmatprep.subr.mxu0 0.0
    %661 = vmatpush1.msra.mxu0 %v609
    %662 = vmatprep.subr.mxu0 0.0
    %663 = vmatpush1.msra.mxu0 %v608
    %664 = vmatprep.subr.mxu0 0.0
    %665 = vmatpush1.msra.mxu0 %v607
    %666 = vmatprep.subr.mxu0 0.0
    %667 = vmatpush1.msra.mxu0 %v606
    %668 = vmatprep.subr.mxu0 0.0
    %669 = vmatpush1.msra.mxu0 %v605
    %670 = vmatprep.subr.mxu0 0.0
    %671 = vmatpush1.msra.mxu0 %v604
    %672 = vmatprep.subr.mxu0 0.0
    %673 = vmatpush1.msra.mxu0 %v603
    %674 = vmatprep.subr.mxu0 0.0
    %675 = vmatpush2.msra.mxu0 %v634
    %676 = vmatprep.subr.mxu0 0.0
    %677 = vmatpush2.msra.mxu0 %v633
    %678 = vmatprep.subr.mxu0 0.0
    %679 = vmatpush2.msra.mxu0 %v632
    %680 = vmatprep.subr.mxu0 0.0
    %681 = vmatpush2.msra.mxu0 %v631
    %682 = vmatprep.subr.mxu0 0.0
    %683 = vmatpush2.msra.mxu0 %v630
    %684 = vmatprep.subr.mxu0 0.0
    %685 = vmatpush2.msra.mxu0 %v629
    %686 = vmatprep.subr.mxu0 0.0
    %687 = vmatpush2.msra.mxu0 %v628
    %688 = vmatprep.subr.mxu0 0.0
    %689 = vmatpush2.msra.mxu0 %v627
    %690 = vmatprep.subr.mxu0 0.0
    %691 = vmatpush2.msra.mxu0 %v626
    %692 = vmatprep.subr.mxu0 0.0
    %693 = vmatpush2.msra.mxu0 %v625
    %694 = vmatprep.subr.mxu0 0.0
    %695 = vmatpush2.msra.mxu0 %v624
    %696 = vmatprep.subr.mxu0 0.0
    %697 = vmatpush2.msra.mxu0 %v623
    %698 = vmatprep.subr.mxu0 0.0
    %699 = vmatpush2.msra.mxu0 %v622
    %700 = vmatprep.subr.mxu0 0.0
    %701 = vmatpush2.msra.mxu0 %v621
    %702 = vmatprep.subr.mxu0 0.0
    %703 = vmatpush2.msra.mxu0 %v620
    %704 = vmatprep.subr.mxu0 0.0
    %705 = vmatpush2.msra.mxu0 %v619
    %706 = vmatprep.mubr.f32.mxu0 %v572
    %707 = vmatmul.mubr.f32.gmra.mxu0 %v571
    %v708 = vpop.f32.mrf.mxu0
    %v709 = vadd.f32 %v640, %v708
    %v710 = vpop.f32.mrf.mxu0
    %711 = vmatprep.mubr.f32.mxu0 %v574
    %712 = vmatmul.mubr.f32.gmra.mxu0 %v573
    %v713 = vpop.f32.mrf.mxu0
    %v714 = vadd.f32 %v640, %v713
    %v715 = vpop.f32.mrf.mxu0
    %716 = vmatprep.mubr.f32.mxu0 %v576
    %717 = vmatmul.mubr.f32.gmra.mxu0 %v575
    %v718 = vpop.f32.mrf.mxu0
    %v719 = vadd.f32 %v640, %v718
    %v720 = vpop.f32.mrf.mxu0
    %721 = vmatprep.mubr.f32.mxu0 %v578
    %722 = vmatmul.mubr.f32.gmra.mxu0 %v577
    %v723 = vpop.f32.mrf.mxu0
    %v724 = vadd.f32 %v640, %v723
    %v725 = vpop.f32.mrf.mxu0
    %726 = vmatprep.mubr.f32.mxu0 %v580
    %727 = vmatmul.mubr.f32.gmra.mxu0 %v579
    %v728 = vpop.f32.mrf.mxu0
    %v729 = vadd.f32 %v640, %v728
    %v730 = vpop.f32.mrf.mxu0
    %731 = vmatprep.mubr.f32.mxu0 %v582
    %732 = vmatmul.mubr.f32.gmra.mxu0 %v581
    %v733 = vpop.f32.mrf.mxu0
    %v734 = vadd.f32 %v640, %v733
    %v735 = vpop.f32.mrf.mxu0
    %736 = vmatprep.mubr.f32.mxu0 %v584
    %737 = vmatmul.mubr.f32.gmra.mxu0 %v583
    %v738 = vpop.f32.mrf.mxu0
    %v739 = vadd.f32 %v640, %v738
    %v740 = vpop.f32.mrf.mxu0
    %741 = vmatprep.mubr.f32.mxu0 %v586
    %742 = vmatmul.mubr.f32.gmra.mxu0 %v585
    %v743 = vpop.f32.mrf.mxu0
    %v744 = vadd.f32 %v640, %v743
    %v745 = vpop.f32.mrf.mxu0
    %746 = vmatprep.mubr.f32.mxu0 %v588
    %747 = vmatmul.mubr.f32.gmra.mxu0 %v587
    %v748 = vpop.f32.mrf.mxu0
    %v749 = vadd.f32 %v640, %v748
    %v750 = vpop.f32.mrf.mxu0
    %751 = vmatprep.mubr.f32.mxu0 %v590
    %752 = vmatmul.mubr.f32.gmra.mxu0 %v589
    %v753 = vpop.f32.mrf.mxu0
    %v754 = vadd.f32 %v640, %v753
    %v755 = vpop.f32.mrf.mxu0
    %756 = vmatprep.mubr.f32.mxu0 %v592
    %757 = vmatmul.mubr.f32.gmra.mxu0 %v591
    %v758 = vpop.f32.mrf.mxu0
    %v759 = vadd.f32 %v640, %v758
    %v760 = vpop.f32.mrf.mxu0
    %761 = vmatprep.mubr.f32.mxu0 %v594
    %762 = vmatmul.mubr.f32.gmra.mxu0 %v593
    %v763 = vpop.f32.mrf.mxu0
    %v764 = vadd.f32 %v640, %v763
    %v765 = vpop.f32.mrf.mxu0
    %766 = vmatprep.mubr.f32.mxu0 %v596
    %767 = vmatmul.mubr.f32.gmra.mxu0 %v595
    %v768 = vpop.f32.mrf.mxu0
    %v769 = vadd.f32 %v640, %v768
    %v770 = vpop.f32.mrf.mxu0
    %771 = vmatprep.mubr.f32.mxu0 %v598
    %772 = vmatmul.mubr.f32.gmra.mxu0 %v597
    %v773 = vpop.f32.mrf.mxu0
    %v774 = vadd.f32 %v640, %v773
    %v775 = vpop.f32.mrf.mxu0
    %776 = vmatprep.mubr.f32.mxu0 %v600
    %777 = vmatmul.mubr.f32.gmra.mxu0 %v599
    %v778 = vpop.f32.mrf.mxu0
    %v779 = vadd.f32 %v640, %v778
    %v780 = vpop.f32.mrf.mxu0
    %781 = vmatprep.mubr.f32.mxu0 %v602
    %782 = vmatmul.mubr.f32.gmra.mxu0 %v601
    %v783 = vpop.f32.mrf.mxu0
    %v784 = vadd.f32 %v640, %v783
    %v785 = vpop.f32.mrf.mxu0
    %786 = vdwg.mxu0
    %v787 = vmax.f32 %v709, 0.0
    %v788 = vmax.f32 %v714, 0.0
    %v789 = vmax.f32 %v719, 0.0
    %v790 = vmax.f32 %v724, 0.0
    %v791 = vmax.f32 %v729, 0.0
    %v792 = vmax.f32 %v734, 0.0
    %v793 = vmax.f32 %v739, 0.0
    %v794 = vmax.f32 %v744, 0.0
    %v795 = vmax.f32 %v749, 0.0
    %v796 = vmax.f32 %v754, 0.0
    %v797 = vmax.f32 %v759, 0.0
    %v798 = vmax.f32 %v764, 0.0
    %v799 = vmax.f32 %v769, 0.0
    %v800 = vmax.f32 %v774, 0.0
    %v801 = vmax.f32 %v779, 0.0
    %v802 = vmax.f32 %v784, 0.0
    %v803 = vld [vmem:[%s7] sm:$0xff]
    %v804 = vld [vmem:[%s8] sm:$0xff]
    %806 = vset.pattern.permute.xlu0 0
    %807 = vperm.xlu0 %806, %v804
    %v808 = vpop.permute.xlu0 %807
    %810 = vmatprep.subr.mxu0 0.0
    %811 = vmatpush1.xpose.msra.mxu0 %v802
    %812 = vmatprep.subr.mxu0 0.0
    %813 = vmatpush1.xpose.msra.mxu0 %v801
    %814 = vmatprep.subr.mxu0 0.0
    %815 = vmatpush1.xpose.msra.mxu0 %v800
    %816 = vmatprep.subr.mxu0 0.0
    %817 = vmatpush1.xpose.msra.mxu0 %v799
    %818 = vmatprep.subr.mxu0 0.0
    %819 = vmatpush1.xpose.msra.mxu0 %v798
    %820 = vmatprep.subr.mxu0 0.0
    %821 = vmatpush1.xpose.msra.mxu0 %v797
    %822 = vmatprep.subr.mxu0 0.0
    %823 = vmatpush1.xpose.msra.mxu0 %v796
    %824 = vmatprep.subr.mxu0 0.0
    %825 = vmatpush1.xpose.msra.mxu0 %v795
    %826 = vmatprep.subr.mxu0 0.0
    %827 = vmatpush1.xpose.msra.mxu0 %v794
    %828 = vmatprep.subr.mxu0 0.0
    %829 = vmatpush1.xpose.msra.mxu0 %v793
    %830 = vmatprep.subr.mxu0 0.0
    %831 = vmatpush1.xpose.msra.mxu0 %v792
    %832 = vmatprep.subr.mxu0 0.0
    %833 = vmatpush1.xpose.msra.mxu0 %v791
    %834 = vmatprep.subr.mxu0 0.0
    %835 = vmatpush1.xpose.msra.mxu0 %v790
    %836 = vmatprep.subr.mxu0 0.0
    %837 = vmatpush1.xpose.msra.mxu0 %v789
    %838 = vmatprep.subr.mxu0 0.0
    %839 = vmatpush1.xpose.msra.mxu0 %v788
    %840 = vmatprep.subr.mxu0 0.0
    %841 = vmatpush1.xpose.msra.mxu0 %v787
    %842 = vmatprep.subr.mxu0 0.0
    %843 = vmatpush2.xpose.msra.mxu0 0.0
    %844 = vmatprep.subr.mxu0 0.0
    %845 = vmatpush2.xpose.msra.mxu0 0.0
    %846 = vmatprep.subr.mxu0 0.0
    %847 = vmatpush2.xpose.msra.mxu0 0.0
    %848 = vmatprep.subr.mxu0 0.0
    %849 = vmatpush2.xpose.msra.mxu0 0.0
    %850 = vmatprep.subr.mxu0 0.0
    %851 = vmatpush2.xpose.msra.mxu0 0.0
    %852 = vmatprep.subr.mxu0 0.0
    %853 = vmatpush2.xpose.msra.mxu0 0.0
    %854 = vmatprep.subr.mxu0 0.0
    %855 = vmatpush2.xpose.msra.mxu0 0.0
    %856 = vmatprep.subr.mxu0 0.0
    %857 = vmatpush2.xpose.msra.mxu0 0.0
    %858 = vmatprep.subr.mxu0 0.0
    %859 = vmatpush2.xpose.msra.mxu0 0.0
    %860 = vmatprep.subr.mxu0 0.0
    %861 = vmatpush2.xpose.msra.mxu0 0.0
    %862 = vmatprep.subr.mxu0 0.0
    %863 = vmatpush2.xpose.msra.mxu0 0.0
    %864 = vmatprep.subr.mxu0 0.0
    %865 = vmatpush2.xpose.msra.mxu0 0.0
    %866 = vmatprep.subr.mxu0 0.0
    %867 = vmatpush2.xpose.msra.mxu0 0.0
    %868 = vmatprep.subr.mxu0 0.0
    %869 = vmatpush2.xpose.msra.mxu0 0.0
    %870 = vmatprep.subr.mxu0 0.0
    %871 = vmatpush2.xpose.msra.mxu0 0.0
    %872 = vmatprep.subr.mxu0 0.0
    %873 = vmatpush2.xpose.msra.mxu0 0.0
    %874 = vmatprep.mubr.f32.mxu0 0.0
    %875 = vmatmul.mubr.f32.gmra.mxu0 %v803
    %v876 = vpop.f32.mrf.mxu0
    %v877 = vadd.f32 %v808, %v876
    %v878 = vpop.f32.mrf.mxu0
    %879 = vdwg.mxu0
    %v880 = vlaneseq
    %v881 = vshrl.u32 %v880, 7
    %v882 = vtanh.pop %v877
    %v883 = vmax.f32 %v877, 0.0
    %v884 = vand.u32 2147483647, %v877
    %v885 = vsub.f32 0.0, %v884
    %v886 = vmul.f32 %v885, 1.442695
    %v887 = vpow.pop %v886
    %v888 = vadd.f32 %v887, 1.0
    %v889 = vlog2.pop %v888
    %v890 = vmul.f32 %v889, 0.6931472
    %v891 = vmul.f32 -0.5, %v887
    %v892 = vadd.f32 %v891, 1.0
    %v893 = vmul.f32 %v892, %v887
    %v894 = vand.u32 2147483647, %v887
    %vm895 = vcmp.lt.f32.partialorder %v894, 0.0004427343
    %v896 = vsel %vm895, %v893, %v890
    %v897 = vadd.f32 %v883, %v896
    %vm898 = vcmp.eq.s32.totalorder %v881, 0
    %v899 = vsel %vm898, %v882, %v897
    %900 = vst [vmem:[%s9] sm:$0xff] %v899
    // Predicated region
    $region46: #{actor_forward.1} parent=1 // pred_check
      _
    $region47: #{actor_forward.1} parent=1 // pred_check_branch
      %902 = sbr.rel (0) target = $region49
    $region48: #{actor_forward.1} parent=1 // pred_region
      _
    $region49: #{actor_forward.1} parent=1 // pred_fallthru
      _
    // Predicated region
    $region50: #{actor_forward.1} parent=1 // pred_check
      _
    $region51: #{actor_forward.1} parent=1 // pred_check_branch
      %904 = sbr.rel (0) target = $region53
    $region52: #{actor_forward.1} parent=1 // pred_region
      _
    $region53: #{actor_forward.1} parent=1 // pred_fallthru
      _
    %905 = vsyncpa [#allocation3], 1
    %906 = vsyncpa [#allocation5], 1

</llo_original>
